<compile_context>
chip_gen: v7x
topology: tpu7x:2x2x1
jax: 0.10.0
libtpu: 0.0.40
codegen_flags: <defaults>
</compile_context>

<pallas_src>
import jax
import jax.numpy as jnp
from jax.experimental import pallas as pl
from jax.experimental.pallas import tpu as pltpu

_LANE = 128


def _round_down(x, m):
    return max(m, (x // m) * m)


def _vmem_capacity_bytes():
    try:
        return int(pltpu.get_tpu_info().vmem_capacity_bytes)
    except Exception:
        # Conservative default = v7x per-TC physical VMEM.
        return 64 * 1024 * 1024


def _choose_tiles(B, ND, x_itemsize, pos_itemsize, out_itemsize,
                  target_block_bytes, vmem_budget):
    """Pick (batch_tile, flat_feature_tile)."""
    # dtype-aware sublane multiple: 8 for f32, 16 for bf16, 32 for int8/fp8.
    sub_mult = max(8, 32 // min(x_itemsize, out_itemsize))
    blk_elem_bytes = max(x_itemsize, out_itemsize)

    tb = sub_mult if B >= sub_mult else B

    # Lane tile: multiple of 128 for unmasked vld/vst; if N*D is not
    # 128-aligned the only legal block is the full flattened row.
    if ND % _LANE == 0:
        tc = min(ND, _round_down(target_block_bytes // max(tb * blk_elem_bytes, 1),
                                 _LANE))
    else:
        # TODO(synk): odd N*D -> full-row block; fold a 128-padded pos table
        # upstream if lane density matters for such shapes.
        tc = ND

    if tc == ND:
        # Whole flattened row per block: grow the batch tile toward the
        # target block size ...
        row_bytes = ND * blk_elem_bytes
        if B >= sub_mult:
            want_tb = _round_down(
                max(target_block_bytes // max(row_bytes, 1), sub_mult), sub_mult)
            tb = min(want_tb, pl.cdiv(B, sub_mult) * sub_mult)
        else:
            tb = B
        # ... but clamp so the double-buffered footprint
        # (2*x + 2*out + 2*pos blocks) fits half the VMEM budget. This guards
        # large non-128-aligned ND on v7x's 64 MiB VMEM.
        per_row_bytes = ND * (x_itemsize + out_itemsize)
        max_tb_vmem = (vmem_budget // 2 - 2 * ND * pos_itemsize) // max(
            2 * per_row_bytes, 1)
        max_tb_vmem = max(1, max_tb_vmem)
        if tb > max_tb_vmem:
            tb = (_round_down(max_tb_vmem, sub_mult)
                  if max_tb_vmem >= sub_mult else max_tb_vmem)

    # Keep >=2 grid steps on a parallel axis for non-trivial inputs so v7x's
    # two TensorCores both get work.
    n_c = pl.cdiv(ND, tc)
    n_b = pl.cdiv(B, tb)
    if (n_c == 1 and n_b == 1 and B >= 2 * sub_mult
            and B * ND * blk_elem_bytes > (1 << 20)):
        tb = _round_down(max(sub_mult, tb // 2), sub_mult)

    return tb, tc


def _add_pos_kernel(x_ref, pos_ref, o_ref):
    # x_ref: (TB, TC), pos_ref: (1, TC) -> implicit sublane broadcast on VPU.
    # dtype promotion rides the VPU (free slack on a mem-bound kernel).
    o_ref[...] = x_ref[...].astype(o_ref.dtype) + pos_ref[...].astype(o_ref.dtype)


def add_position_embedding(x, pos_embedding, *, donate_x=False):
    """x: (B, N, D), pos_embedding: (N, D) -> (B, N, D) = x + pos_embedding."""
    B, N, D = x.shape
    assert pos_embedding.shape == (N, D)

    out_dtype = jnp.promote_types(x.dtype, pos_embedding.dtype)
    x_itemsize = jnp.dtype(x.dtype).itemsize
    pos_itemsize = jnp.dtype(pos_embedding.dtype).itemsize
    out_itemsize = jnp.dtype(out_dtype).itemsize
    ND = N * D

    # Free (row-major trailing-dim-collapsing) reshapes; NO wrapper-side cast.
    x2 = x.reshape(B, ND)
    pos2 = pos_embedding.reshape(1, ND)

    vmem_cap = _vmem_capacity_bytes()
    # Scoped-VMEM budget: up to 64 MiB on 128 MiB chips (v5e/v6e), 32 MiB on v7x.
    vmem_budget = min(vmem_cap // 2, 64 * 1024 * 1024)
    # Block target: 4 MiB on roomy chips, 2 MiB on v7x.
    target_block_bytes = (4 << 20) if vmem_cap >= 96 * 1024 * 1024 else (2 << 20)

    tb, tc = _choose_tiles(B, ND, x_itemsize, pos_itemsize, out_itemsize,
                           target_block_bytes, vmem_budget)
    # Batch innermost: grid = (feature tiles, batch tiles).
    grid = (pl.cdiv(ND, tc), pl.cdiv(B, tb))

    # Actual double-buffered footprint (x + out + pos blocks), with 2x headroom.
    blk_bytes = tb * tc * (x_itemsize + out_itemsize) + tc * pos_itemsize
    vmem_limit = int(min(vmem_budget, max(8 * 1024 * 1024, 4 * blk_bytes)))

    cost = pl.CostEstimate(
        flops=B * ND,
        transcendentals=0,
        # x read once (native dtype), out written once, pos read once total
        # (de-duplicated by the batch-innermost grid order).
        bytes_accessed=B * ND * x_itemsize + B * ND * out_itemsize
        + ND * pos_itemsize,
    )

    # Aliasing x into the output only makes sense when no dtype change occurs.
    aliases = {0: 0} if (donate_x and x.dtype == out_dtype) else {}

    out2 = pl.pallas_call(
        _add_pos_kernel,
        out_shape=jax.ShapeDtypeStruct((B, ND), out_dtype),
        grid_spec=pltpu.PrefetchScalarGridSpec(
            num_scalar_prefetch=0,
            grid=grid,
            in_specs=[
                pl.BlockSpec((tb, tc), lambda c, b: (b, c)),
                pl.BlockSpec((1, tc), lambda c, b: (0, c)),
            ],
            out_specs=pl.BlockSpec((tb, tc), lambda c, b: (b, c)),
        ),
        compiler_params=pltpu.CompilerParams(
            dimension_semantics=("parallel", "parallel"),
            vmem_limit_bytes=vmem_limit,
        ),
        cost_estimate=cost,
        input_output_aliases=aliases,
    )(x2, pos2)

    return out2.reshape(B, N, D)


if __name__ == "__main__":
    key = jax.random.PRNGKey(0)
    kx, kp, kx2, kp2, kx3, kp3, kx4, kp4 = jax.random.split(key, 8)

    # Small shape consistent with the module: batch=2, num_patches=8, dim=32.
    B, N, D = 2, 8, 32
    x = jax.random.normal(kx, (B, N, D), dtype=jnp.float32)
    # nn.Parameter(torch.Tensor(N, D)) is uninitialized in the original module;
    # use a deterministic normal init here.
    pos_embedding = jax.random.normal(kp, (N, D), dtype=jnp.float32)
    out = jax.block_until_ready(add_position_embedding(x, pos_embedding))
    ref = x + pos_embedding[None, :, :]
    assert out.shape == (B, N, D)
    assert jnp.allclose(out, ref, atol=1e-6), "mismatch (small f32)"

    # Larger shape exercising the multi-step grid (batch innermost).
    B2, N2, D2 = 32, 128, 128
    x_l = jax.random.normal(kx2, (B2, N2, D2), dtype=jnp.float32)
    pos_l = jax.random.normal(kp2, (N2, D2), dtype=jnp.float32)
    out_l = jax.block_until_ready(add_position_embedding(x_l, pos_l))
    assert jnp.allclose(out_l, x_l + pos_l[None], atol=1e-6), "mismatch (tiled)"

    # Mixed-dtype path: bf16 activations + f32 pos table, promoted in-kernel.
    x_bf = jax.random.normal(kx3, (B2, N2, D2), dtype=jnp.bfloat16)
    pos_f = jax.random.normal(kp3, (N2, D2), dtype=jnp.float32)
    out_bf = jax.block_until_ready(add_position_embedding(x_bf, pos_f))
    ref_bf = x_bf.astype(jnp.float32) + pos_f[None]
    assert out_bf.dtype == jnp.float32
    assert jnp.allclose(out_bf, ref_bf, atol=1e-6), "mismatch (bf16+f32)"

    # Non-128-aligned N*D fallback (full-row block).
    B3, N3, D3 = 4, 7, 33
    x_u = jax.random.normal(kx4, (B3, N3, D3), dtype=jnp.float32)
    pos_u = jax.random.normal(kp4, (N3, D3), dtype=jnp.float32)
    out_u = jax.block_until_ready(add_position_embedding(x_u, pos_u))
    assert jnp.allclose(out_u, x_u + pos_u[None], atol=1e-6), "mismatch (unaligned)"

    print("KERNEL_OK")
</pallas_src>

<mosaic_0001>
module attributes {stable_mosaic.version = 11 : i64} {
  func.func @_add_pos_kernel(%arg0: i32, %arg1: i32, %arg2: memref<2x256xf32, #tpu.memory_space<vmem>>, %arg3: memref<1x256xf32, #tpu.memory_space<vmem>>, %arg4: memref<2x256xf32, #tpu.memory_space<vmem>>) attributes {dimension_semantics = [#tpu.dimension_semantics<parallel>, #tpu.dimension_semantics<parallel>], iteration_bounds = array<i64: 1, 1>, scalar_prefetch = 0 : i64, scratch_operands = 0 : i64, tpu.core_type = #tpu.core_type<tc>, window_params = [{transform_indices = @transform_0, window_bounds = array<i64: 2, 256>}, {transform_indices = @transform_1, window_bounds = array<i64: 1, 256>}, {transform_indices = @transform_2, window_bounds = array<i64: 2, 256>}]} {
    %c0 = arith.constant 0 : index
    %c0_0 = arith.constant 0 : index
    %0 = vector.load %arg2[%c0, %c0_0] : memref<2x256xf32, #tpu.memory_space<vmem>>, vector<2x256xf32>
    %c0_1 = arith.constant 0 : index
    %c0_2 = arith.constant 0 : index
    %1 = vector.load %arg3[%c0_1, %c0_2] : memref<1x256xf32, #tpu.memory_space<vmem>>, vector<1x256xf32>
    %2 = vector.broadcast %1 : vector<1x256xf32> to vector<2x256xf32>
    %3 = arith.addf %0, %2 : vector<2x256xf32>
    %c0_3 = arith.constant 0 : index
    %c0_4 = arith.constant 0 : index
    %4 = vector.load %arg4[%c0_3, %c0_4] : memref<2x256xf32, #tpu.memory_space<vmem>>, vector<2x256xf32>
    tpu.vector_store %arg4[%c0_3, %c0_4], %3 {strides = array<i32>} : memref<2x256xf32, #tpu.memory_space<vmem>>, vector<2x256xf32>,
    return
  }
  func.func @transform_0(%arg0: i32, %arg1: i32) -> (i32, i32) {
    %c0_i32 = arith.constant 0 : i32
    return %arg1, %arg0 : i32, i32
  }
  func.func @transform_1(%arg0: i32, %arg1: i32) -> (i32, i32) {
    %c0_i32 = arith.constant 0 : i32
    %c0_i32_0 = arith.constant 0 : i32
    return %c0_i32, %arg0 : i32, i32
  }
  func.func @transform_2(%arg0: i32, %arg1: i32) -> (i32, i32) {
    %c0_i32 = arith.constant 0 : i32
    return %arg1, %arg0 : i32, i32
  }
}

</mosaic_0001>

<llo_original>
// kernel: tpu_custom_call.1
$region0: #{tpu_custom_call.1}
  #allocation0 [shape = 'u32[]', space=smem, size = 0x4, offset = 0x4, fixed_abs, tag = 'smem constant byte address 0x4 - core index']
  #allocation1 [shape = 'u32[144,128]{1,0:T(1,128)}', space=vmem, size = 0x12000, scoped, tag = 'internal scratch']
  %s0 = inlined_call_operand.hbm [shape: f32[2,256], index: 0, kind: input, shape index: {}]
  %s1 = inlined_call_operand.vmem [shape: f32[1,256], index: 1, kind: input, shape index: {}]
  %s2 = inlined_call_operand.hbm [shape: f32[2,256], index: 2, kind: output, shape index: {}]
  %s3 = sld [smem:[#allocation0]]
  $region22: #{tpu_custom_call.1} parent=0
    _
  %s5 = ssub.s32 1, %s3
  %s6 = scalar_select 0, %s5, %s3
  $region1: #{tpu_custom_call.1} parent=0
    #allocation2 [shape = 'u8[2048]{0}', space=vmem, size = 0x800, scoped, tag = 'input window, operand 0, single buffered']
    #allocation3 [shape = 's32[1]{0}', space=sflag, size = 0x4, scoped, tag = 'scoped memory for tpu_custom_call.1']
    #allocation4 [shape = 's32[1]{0}', space=sflag, size = 0x4, scoped, tag = 'scoped memory for tpu_custom_call.1']
    #allocation5 [shape = 'u8[2048]{0}', space=vmem, size = 0x800, scoped, tag = 'output window, operand 0, single buffered']
    %7 = vsyncpa [#allocation3], 0
    %8 = vsyncpa [#allocation4], 0
    // Predicated region
    $region2: #{tpu_custom_call.1} parent=1 // pred_check
      _
    $region3: #{tpu_custom_call.1} parent=1 // pred_check_branch
      %10 = sbr.rel (0) target = $region5
    $region4: #{tpu_custom_call.1} parent=1 // pred_region
      %s12 = ssub.s32 64, 64
      %13 = vsyncadd [#allocation3], %s12
      %s15 = sshll.u32 [#allocation2], 4
      %s16 = int_to_ptr.vmem [resolvable:$true] %s15
      %18 = dma.hbm_to_vmem [thread:$0]  %s0, 64, %s16, [#allocation3]
    $region5: #{tpu_custom_call.1} parent=1 // pred_fallthru
      _
    // Predicated region
    $region6: #{tpu_custom_call.1} parent=1 // pred_check
      _
    $region7: #{tpu_custom_call.1} parent=1 // pred_check_branch
      %20 = sbr.rel (0) target = $region9
    $region8: #{tpu_custom_call.1} parent=1 // pred_region
      _
    $region9: #{tpu_custom_call.1} parent=1 // pred_fallthru
      _
    // Predicated region
    $region10: #{tpu_custom_call.1} parent=1 // pred_check
      _
    $region11: #{tpu_custom_call.1} parent=1 // pred_check_branch
      %22 = sbr.rel (0) target = $region13
    $region12: #{tpu_custom_call.1} parent=1 // pred_region
      %23 = dma.done [#allocation3], 64
    $region13: #{tpu_custom_call.1} parent=1 // pred_fallthru
      _
    %v24 = vld [vmem:[#allocation2] sm:$0xf]
    %v25 = vld [vmem:[%s1] sm:$0x3]
    %v27 = vlaneseq
    %v28 = vshrl.u32 %v27, 7
    %v29 = vsub.s32 0, %v28
    %v30 = vrot.slane %v25, %v29
    %v31 = vlaneseq
    %v32 = vshrl.u32 %v31, 7
    %v33 = vsub.s32 1, %v32
    %v34 = vrot.slane %v25, %v33
    %v35 = vcombine.low %v30, %v34
    %v37 = vunpack.c.l.s4 1983009808
    %v38 = vunpack.c.0.s8 %v37
    %v39 = vlaneseq
    %v40 = vshrl.u32 %v39, 7
    %v41 = vsub.s32 %v38, %v40
    %v42 = vrot.slane %v35, %v41
    %v44 = vadd.f32 %v24, %v42
    %45 = vst [vmem:[#allocation5] sm:$0xf] %v44
    // Predicated region
    $region14: #{tpu_custom_call.1} parent=1 // pred_check
      _
    $region15: #{tpu_custom_call.1} parent=1 // pred_check_branch
      %47 = sbr.rel (0) target = $region17
    $region16: #{tpu_custom_call.1} parent=1 // pred_region
      %s49 = ssub.s32 64, 64
      %50 = vsyncadd [#allocation4], %s49
      %s52 = sshll.u32 [#allocation5], 4
      %s53 = int_to_ptr.vmem [resolvable:$true] %s52
      %55 = dma.vmem_to_hbm [thread:$0]  %s53, 64, %s2, [#allocation4]
    $region17: #{tpu_custom_call.1} parent=1 // pred_fallthru
      _
    // Predicated region
    $region18: #{tpu_custom_call.1} parent=1 // pred_check
      _
    $region19: #{tpu_custom_call.1} parent=1 // pred_check_branch
      %57 = sbr.rel (0) target = $region21
    $region20: #{tpu_custom_call.1} parent=1 // pred_region
      %58 = dma.done [#allocation4], 64
    $region21: #{tpu_custom_call.1} parent=1 // pred_fallthru
      _
    %59 = vsyncpa [#allocation3], 1
    %60 = vsyncpa [#allocation4], 1

</llo_original>
